<compile_context>
chip_gen: v5e
topology: v5e:2x2
jax: 0.10.0
libtpu: 0.0.40
codegen_flags: <defaults>
</compile_context>

<pallas_src>
import functools

import jax
import jax.numpy as jnp
from jax import lax
from jax.experimental import pallas as pl
from jax.experimental.pallas import tpu as pltpu


def _round_up(x, m):
    return ((x + m - 1) // m) * m


# --------------------------------------------------------------------------- #
# Kernel 1: per-node projections  Pu = h @ Wu.T,  Pv = h @ Wv.T
#           stored transposed (lane-dense): Pu_T, Pv_T : [C, N]
# --------------------------------------------------------------------------- #
def _node_projection_kernel(h_ref, wu_ref, wv_ref, pu_t_ref, pv_t_ref):
    # h_ref: [tile_n, F]; wu_ref / wv_ref: [C, F]; outputs: [C, tile_n]
    h = h_ref[...]
    dn = (((1,), (1,)), ((), ()))  # contract F of both operands -> 'cf,nf->cn'
    pu_t_ref[...] = lax.dot_general(
        wu_ref[...], h, dn, preferred_element_type=jnp.float32
    ).astype(pu_t_ref.dtype)
    pv_t_ref[...] = lax.dot_general(
        wv_ref[...], h, dn, preferred_element_type=jnp.float32
    ).astype(pv_t_ref.dtype)


# --------------------------------------------------------------------------- #
# Kernel 2: edge scores via one-hot MXU gather of the projection tables.
#   out_T[:, e] = Pu_T[:, src[e]] + Pv_T[:, dst[e]] + b
# --------------------------------------------------------------------------- #
def _edge_score_kernel(src_ref, dst_ref, pu_ref, pv_ref, b_ref, out_ref, *, n_blk):
    # src/dst: [1, tile_e] int32 (per-tile); pu/pv: [C, N_pad] (VMEM resident);
    # b: [C, 1]; out: [C, tile_e] (lane-dense stores).
    c, tile_e = out_ref.shape
    n_pad = pu_ref.shape[1]
    src = src_ref[...]                       # [1, tile_e]
    dst = dst_ref[...]

    def body(j, acc):
        off = pl.multiple_of(j * n_blk, n_blk)
        # node ids for this block, varying along sublanes: [n_blk, tile_e]
        ids = lax.broadcasted_iota(jnp.int32, (n_blk, tile_e), 0) + off
        oh_u = (ids == src).astype(jnp.float32)          # one-hot over src
        oh_v = (ids == dst).astype(jnp.float32)          # one-hot over dst
        pu = pu_ref[:, pl.ds(off, n_blk)]                # [C, n_blk]
        pv = pv_ref[:, pl.ds(off, n_blk)]
        acc = acc + jnp.dot(pu, oh_u, preferred_element_type=jnp.float32)
        acc = acc + jnp.dot(pv, oh_v, preferred_element_type=jnp.float32)
        return acc

    acc = lax.fori_loop(0, n_pad // n_blk, body,
                        jnp.zeros((c, tile_e), jnp.float32))
    out_ref[...] = (acc + b_ref[...]).astype(out_ref.dtype)


# --------------------------------------------------------------------------- #
# Wrapper
# --------------------------------------------------------------------------- #
@functools.partial(jax.jit, static_argnames=("tile_e", "n_blk"))
def mlp_predictor_forward(h, src, dst, W, b, *, tile_e=512, n_blk=512):
    """Pallas implementation of MLPPredictor.forward.

    Args:
      h:   [N, F]  node features.
      src: [E]     edge source node indices (int).
      dst: [E]     edge destination node indices (int).
      W:   [C, 2F] Linear weight (PyTorch out_features x in_features).
      b:   [C]     Linear bias.
    Returns:
      [E, C] edge scores.
    """
    N, F = h.shape
    C = W.shape[0]
    E = src.shape[0]
    itemsize = 4  # everything f32 on the compute path

    # Split Linear(2F -> C) into its h_u / h_v halves.
    wu = W[:, :F]
    wv = W[:, F:]
    b_col = b.reshape(C, 1).astype(jnp.float32)

    # ----- node-dimension tiling (multiple of 128 -> lane-dense P tables) -----
    n_blk = min(_round_up(int(n_blk), 128), _round_up(N, 128))
    n_pad = _round_up(N, n_blk)
    h_p = jnp.pad(h, ((0, n_pad - N), (0, 0)))

    # ----- edge-dimension tiling (multiple of 128 -> lane-dense stores) -------
    tile = max(128, min(_round_up(int(tile_e), 128), _round_up(max(E, 1), 128)))
    e_pad = _round_up(max(E, 1), tile)
    pad_e = e_pad - E
    src_p = jnp.pad(jnp.clip(src.astype(jnp.int32), 0, N - 1),
                    (0, pad_e)).reshape(1, e_pad)
    dst_p = jnp.pad(jnp.clip(dst.astype(jnp.int32), 0, N - 1),
                    (0, pad_e)).reshape(1, e_pad)

    # ----- kernel 1: node projections -----------------------------------------
    proj_vmem = itemsize * (2 * n_blk * F          # double-buffered h tiles
                            + 2 * C * F            # resident Wu/Wv
                            + 2 * 2 * C * n_blk)   # double-buffered outputs
    pu_t, pv_t = pl.pallas_call(
        _node_projection_kernel,
        out_shape=(jax.ShapeDtypeStruct((C, n_pad), jnp.float32),
                   jax.ShapeDtypeStruct((C, n_pad), jnp.float32)),
        grid=(n_pad // n_blk,),
        in_specs=[pl.BlockSpec((n_blk, F), lambda i: (i, 0)),
                  pl.BlockSpec((C, F), lambda i: (0, 0)),
                  pl.BlockSpec((C, F), lambda i: (0, 0))],
        out_specs=(pl.BlockSpec((C, n_blk), lambda i: (0, i)),
                   pl.BlockSpec((C, n_blk), lambda i: (0, i))),
        compiler_params=pltpu.CompilerParams(
            dimension_semantics=("parallel",),
            vmem_limit_bytes=int(min(max(proj_vmem + (2 << 20), 4 << 20), 48 << 20))),
        cost_estimate=pl.CostEstimate(
            flops=4 * n_pad * F * C,
            transcendentals=0,
            bytes_accessed=itemsize * (n_pad * F + 2 * C * F + 2 * C * n_pad)),
    )(h_p, wu, wv)

    # ----- kernel 2: edge scores (one-hot MXU gather, transposed output) ------
    edge_vmem = itemsize * (2 * C * n_pad          # resident Pu_T / Pv_T
                            + C                    # bias
                            + 2 * 2 * tile         # double-buffered src/dst tiles
                            + 2 * C * tile         # double-buffered output tiles
                            + 5 * n_blk * tile)    # iota + one-hot temporaries
    edge_kernel = functools.partial(_edge_score_kernel, n_blk=n_blk)
    out_t = pl.pallas_call(
        edge_kernel,
        out_shape=jax.ShapeDtypeStruct((C, e_pad), jnp.float32),
        grid=(e_pad // tile,),
        in_specs=[pl.BlockSpec((1, tile), lambda i: (0, i)),      # src tile
                  pl.BlockSpec((1, tile), lambda i: (0, i)),      # dst tile
                  pl.BlockSpec((C, n_pad), lambda i: (0, 0)),     # Pu_T resident
                  pl.BlockSpec((C, n_pad), lambda i: (0, 0)),     # Pv_T resident
                  pl.BlockSpec((C, 1), lambda i: (0, 0))],        # bias resident
        out_specs=pl.BlockSpec((C, tile), lambda i: (0, i)),
        compiler_params=pltpu.CompilerParams(
            dimension_semantics=("parallel",),
            vmem_limit_bytes=int(min(max(edge_vmem + (2 << 20), 4 << 20), 48 << 20))),
        cost_estimate=pl.CostEstimate(
            flops=4 * C * n_pad * e_pad,
            transcendentals=0,
            bytes_accessed=itemsize * (2 * e_pad + C * e_pad + 2 * C * n_pad)),
    )(src_p, dst_p, pu_t, pv_t, b_col)

    # Transposed lane-dense slab -> final [E, C] (cheap XLA transpose).
    return out_t[:, :E].T.astype(h.dtype)


if __name__ == "__main__":
    # Small, deterministic problem: 16 nodes, 32 features, 8 output classes,
    # 24 edges of a synthetic DAG.
    key = jax.random.PRNGKey(0)
    k_h, k_w, k_b, k_src, k_dst = jax.random.split(key, 5)

    N, F, C, E = 16, 32, 8, 24

    h = jax.random.normal(k_h, (N, F), dtype=jnp.float32)

    # Deterministic "Linear(2F, C)" parameters (PyTorch-style uniform init).
    bound = 1.0 / jnp.sqrt(2.0 * F)
    W = jax.random.uniform(k_w, (C, 2 * F), minval=-bound, maxval=bound,
                           dtype=jnp.float32)
    b = jax.random.uniform(k_b, (C,), minval=-bound, maxval=bound,
                           dtype=jnp.float32)

    src = jax.random.randint(k_src, (E,), 0, N, dtype=jnp.int32)
    dst = jax.random.randint(k_dst, (E,), 0, N, dtype=jnp.int32)

    score = mlp_predictor_forward(h, src, dst, W, b)
    score = jax.block_until_ready(score)

    # Pure-JAX reference of the exact PyTorch semantics (dropout is a no-op).
    ref = jnp.concatenate([h[src], h[dst]], axis=1) @ W.T + b
    assert score.shape == (E, C)
    assert jnp.allclose(score, ref, atol=1e-5, rtol=1e-5), "mismatch vs reference"

    print("KERNEL_OK")
</pallas_src>

<mosaic_0001>
module attributes {stable_mosaic.version = 11 : i64} {
  func.func @_node_projection_kernel(%arg0: i32, %arg1: memref<128x32xf32, #tpu.memory_space<vmem>>, %arg2: memref<8x32xf32, #tpu.memory_space<vmem>>, %arg3: memref<8x32xf32, #tpu.memory_space<vmem>>, %arg4: memref<8x128xf32, #tpu.memory_space<vmem>>, %arg5: memref<8x128xf32, #tpu.memory_space<vmem>>) attributes {dimension_semantics = [#tpu.dimension_semantics<parallel>], iteration_bounds = array<i64: 1>, scalar_prefetch = 0 : i64, scratch_operands = 0 : i64, tpu.core_type = #tpu.core_type<tc>, window_params = [{transform_indices = @transform_0, window_bounds = array<i64: 128, 32>}, {pipeline_mode = #tpu.pipeline_mode<synchronous>, transform_indices = @transform_1, window_bounds = array<i64: 8, 32>}, {pipeline_mode = #tpu.pipeline_mode<synchronous>, transform_indices = @transform_2, window_bounds = array<i64: 8, 32>}, {transform_indices = @transform_3, window_bounds = array<i64: 8, 128>}, {transform_indices = @transform_4, window_bounds = array<i64: 8, 128>}]} {
    %c0 = arith.constant 0 : index
    %c0_0 = arith.constant 0 : index
    %0 = vector.load %arg1[%c0, %c0_0] : memref<128x32xf32, #tpu.memory_space<vmem>>, vector<128x32xf32>
    %c0_1 = arith.constant 0 : index
    %c0_2 = arith.constant 0 : index
    %1 = vector.load %arg2[%c0_1, %c0_2] : memref<8x32xf32, #tpu.memory_space<vmem>>, vector<8x32xf32>
    %cst = arith.constant dense<0.000000e+00> : vector<8x128xf32>
    %2 = tpu.matmul %1, %0, %cst {dimension_numbers = #tpu.dot_dimension_numbers<[1], [1], [0], [0], [0, 0, 1, 0], [], []>} : vector<8x32xf32>, vector<128x32xf32>, vector<8x128xf32> -> vector<8x128xf32>
    %c0_3 = arith.constant 0 : index
    %c0_4 = arith.constant 0 : index
    %3 = vector.load %arg4[%c0_3, %c0_4] : memref<8x128xf32, #tpu.memory_space<vmem>>, vector<8x128xf32>
    tpu.vector_store %arg4[%c0_3, %c0_4], %2 {strides = array<i32>} : memref<8x128xf32, #tpu.memory_space<vmem>>, vector<8x128xf32>,
    %c0_5 = arith.constant 0 : index
    %c0_6 = arith.constant 0 : index
    %4 = vector.load %arg3[%c0_5, %c0_6] : memref<8x32xf32, #tpu.memory_space<vmem>>, vector<8x32xf32>
    %cst_7 = arith.constant dense<0.000000e+00> : vector<8x128xf32>
    %5 = tpu.matmul %4, %0, %cst_7 {dimension_numbers = #tpu.dot_dimension_numbers<[1], [1], [0], [0], [0, 0, 1, 0], [], []>} : vector<8x32xf32>, vector<128x32xf32>, vector<8x128xf32> -> vector<8x128xf32>
    %c0_8 = arith.constant 0 : index
    %c0_9 = arith.constant 0 : index
    %6 = vector.load %arg5[%c0_8, %c0_9] : memref<8x128xf32, #tpu.memory_space<vmem>>, vector<8x128xf32>
    tpu.vector_store %arg5[%c0_8, %c0_9], %5 {strides = array<i32>} : memref<8x128xf32, #tpu.memory_space<vmem>>, vector<8x128xf32>,
    return
  }
  func.func @transform_0(%arg0: i32) -> (i32, i32) {
    %c0_i32 = arith.constant 0 : i32
    %c0_i32_0 = arith.constant 0 : i32
    return %arg0, %c0_i32 : i32, i32
  }
  func.func @transform_1(%arg0: i32) -> (i32, i32) {
    %c0_i32 = arith.constant 0 : i32
    %c0_i32_0 = arith.constant 0 : i32
    %c0_i32_1 = arith.constant 0 : i32
    return %c0_i32, %c0_i32_0 : i32, i32
  }
  func.func @transform_2(%arg0: i32) -> (i32, i32) {
    %c0_i32 = arith.constant 0 : i32
    %c0_i32_0 = arith.constant 0 : i32
    %c0_i32_1 = arith.constant 0 : i32
    return %c0_i32, %c0_i32_0 : i32, i32
  }
  func.func @transform_3(%arg0: i32) -> (i32, i32) {
    %c0_i32 = arith.constant 0 : i32
    %c0_i32_0 = arith.constant 0 : i32
    return %c0_i32, %arg0 : i32, i32
  }
  func.func @transform_4(%arg0: i32) -> (i32, i32) {
    %c0_i32 = arith.constant 0 : i32
    %c0_i32_0 = arith.constant 0 : i32
    return %c0_i32, %arg0 : i32, i32
  }
}

module attributes {stable_mosaic.version = 11 : i64} {
  func.func @_edge_score_kernel(%arg0: i32, %arg1: memref<1x128xi32, #tpu.memory_space<vmem>>, %arg2: memref<1x128xi32, #tpu.memory_space<vmem>>, %arg3: memref<8x128xf32, #tpu.memory_space<vmem>>, %arg4: memref<8x128xf32, #tpu.memory_space<vmem>>, %arg5: memref<8x1xf32, #tpu.memory_space<vmem>>, %arg6: memref<8x128xf32, #tpu.memory_space<vmem>>) attributes {dimension_semantics = [#tpu.dimension_semantics<parallel>], iteration_bounds = array<i64: 1>, scalar_prefetch = 0 : i64, scratch_operands = 0 : i64, tpu.core_type = #tpu.core_type<tc>, window_params = [{transform_indices = @transform_0, window_bounds = array<i64: 1, 128>}, {transform_indices = @transform_1, window_bounds = array<i64: 1, 128>}, {pipeline_mode = #tpu.pipeline_mode<synchronous>, transform_indices = @transform_2, window_bounds = array<i64: 8, 128>}, {pipeline_mode = #tpu.pipeline_mode<synchronous>, transform_indices = @transform_3, window_bounds = array<i64: 8, 128>}, {pipeline_mode = #tpu.pipeline_mode<synchronous>, transform_indices = @transform_4, window_bounds = array<i64: 8, 1>}, {transform_indices = @transform_5, window_bounds = array<i64: 8, 128>}]} {
    %c0 = arith.constant 0 : index
    %c0_0 = arith.constant 0 : index
    %0 = vector.load %arg1[%c0, %c0_0] : memref<1x128xi32, #tpu.memory_space<vmem>>, vector<1x128xi32>
    %c0_1 = arith.constant 0 : index
    %c0_2 = arith.constant 0 : index
    %1 = vector.load %arg2[%c0_1, %c0_2] : memref<1x128xi32, #tpu.memory_space<vmem>>, vector<1x128xi32>
    %cst = arith.constant 0.000000e+00 : f32
    %2 = vector.broadcast %cst : f32 to vector<8x128xf32>
    %c0_i32 = arith.constant 0 : i32
    %c128_i32 = arith.constant 128 : i32
    %3 = arith.muli %c0_i32, %c128_i32 : i32
    %4 = tpu.assume_multiple %3, 128 : i32
    %5 = tpu.iota {dimensions = array<i32: 0>} : vector<128x128xi32>
    %6 = vector.broadcast %4 : i32 to vector<128x128xi32>
    %7 = arith.addi %5, %6 : vector<128x128xi32>
    %8 = vector.broadcast %0 : vector<1x128xi32> to vector<128x128xi32>
    %9 = arith.cmpi eq, %7, %8 : vector<128x128xi32>
    %10 = arith.extui %9 : vector<128x128xi1> to vector<128x128xi32>
    %11 = arith.sitofp %10 : vector<128x128xi32> to vector<128x128xf32>
    %12 = vector.broadcast %1 : vector<1x128xi32> to vector<128x128xi32>
    %13 = arith.cmpi eq, %7, %12 : vector<128x128xi32>
    %14 = arith.extui %13 : vector<128x128xi1> to vector<128x128xi32>
    %15 = arith.sitofp %14 : vector<128x128xi32> to vector<128x128xf32>
    %c0_3 = arith.constant 0 : index
    %16 = arith.index_cast %4 : i32 to index
    %17 = vector.load %arg3[%c0_3, %16] : memref<8x128xf32, #tpu.memory_space<vmem>>, vector<8x128xf32>
    %c0_4 = arith.constant 0 : index
    %18 = arith.index_cast %4 : i32 to index
    %19 = vector.load %arg4[%c0_4, %18] : memref<8x128xf32, #tpu.memory_space<vmem>>, vector<8x128xf32>
    %cst_5 = arith.constant dense<0.000000e+00> : vector<8x128xf32>
    %20 = tpu.matmul %17, %11, %cst_5 {dimension_numbers = #tpu.dot_dimension_numbers<[1], [0], [0], [1], [0, 0, 1, 1], [], []>} : vector<8x128xf32>, vector<128x128xf32>, vector<8x128xf32> -> vector<8x128xf32>
    %21 = arith.addf %2, %20 : vector<8x128xf32>
    %cst_6 = arith.constant dense<0.000000e+00> : vector<8x128xf32>
    %22 = tpu.matmul %19, %15, %cst_6 {dimension_numbers = #tpu.dot_dimension_numbers<[1], [0], [0], [1], [0, 0, 1, 1], [], []>} : vector<8x128xf32>, vector<128x128xf32>, vector<8x128xf32> -> vector<8x128xf32>
    %23 = arith.addf %21, %22 : vector<8x128xf32>
    %c1_i32 = arith.constant 1 : i32
    %c0_7 = arith.constant 0 : index
    %c0_8 = arith.constant 0 : index
    %24 = vector.load %arg5[%c0_7, %c0_8] : memref<8x1xf32, #tpu.memory_space<vmem>>, vector<8x1xf32>
    %25 = vector.broadcast %24 : vector<8x1xf32> to vector<8x128xf32>
    %26 = arith.addf %23, %25 : vector<8x128xf32>
    %c0_9 = arith.constant 0 : index
    %c0_10 = arith.constant 0 : index
    %27 = vector.load %arg6[%c0_9, %c0_10] : memref<8x128xf32, #tpu.memory_space<vmem>>, vector<8x128xf32>
    tpu.vector_store %arg6[%c0_9, %c0_10], %26 {strides = array<i32>} : memref<8x128xf32, #tpu.memory_space<vmem>>, vector<8x128xf32>,
    return
  }
  func.func @transform_0(%arg0: i32) -> (i32, i32) {
    %c0_i32 = arith.constant 0 : i32
    %c0_i32_0 = arith.constant 0 : i32
    return %c0_i32, %arg0 : i32, i32
  }
  func.func @transform_1(%arg0: i32) -> (i32, i32) {
    %c0_i32 = arith.constant 0 : i32
    %c0_i32_0 = arith.constant 0 : i32
    return %c0_i32, %arg0 : i32, i32
  }
  func.func @transform_2(%arg0: i32) -> (i32, i32) {
    %c0_i32 = arith.constant 0 : i32
    %c0_i32_0 = arith.constant 0 : i32
    %c0_i32_1 = arith.constant 0 : i32
    return %c0_i32, %c0_i32_0 : i32, i32
  }
  func.func @transform_3(%arg0: i32) -> (i32, i32) {
    %c0_i32 = arith.constant 0 : i32
    %c0_i32_0 = arith.constant 0 : i32
    %c0_i32_1 = arith.constant 0 : i32
    return %c0_i32, %c0_i32_0 : i32, i32
  }
  func.func @transform_4(%arg0: i32) -> (i32, i32) {
    %c0_i32 = arith.constant 0 : i32
    %c0_i32_0 = arith.constant 0 : i32
    %c0_i32_1 = arith.constant 0 : i32
    return %c0_i32, %c0_i32_0 : i32, i32
  }
  func.func @transform_5(%arg0: i32) -> (i32, i32) {
    %c0_i32 = arith.constant 0 : i32
    %c0_i32_0 = arith.constant 0 : i32
    return %c0_i32, %arg0 : i32, i32
  }
}

</mosaic_0001>

<llo_original>
// kernel: mlp_predictor_forward.3
$region0: #{mlp_predictor_forward.3}
  #allocation0 [shape = 'u32[]', space=smem, size = 0x4, offset = 0x4, fixed_abs, tag = 'smem constant byte address 0x4 - core index']
  #allocation1 [shape = 'u32[72,128]{1,0:T(1,128)}', space=vmem, size = 0x9000, scoped, tag = 'internal scratch']
  %s0 = inlined_call_operand.vmem [shape: s32[1,128], index: 0, kind: input, shape index: {}]
  %s1 = inlined_call_operand.vmem [shape: s32[1,128], index: 1, kind: input, shape index: {}]
  %s2 = inlined_call_operand.vmem [shape: f32[8,128], index: 2, kind: input, shape index: {}]
  %s3 = inlined_call_operand.vmem [shape: f32[8,128], index: 3, kind: input, shape index: {}]
  %s4 = inlined_call_operand.vmem [shape: f32[8,1], index: 4, kind: input, shape index: {}]
  %s5 = inlined_call_operand.vmem [shape: f32[8,128], index: 5, kind: output, shape index: {}]
  %s6 = sld [smem:[#allocation0]]
  $region30: #{mlp_predictor_forward.3} parent=0
    _
  %s8 = ssub.s32 1, %s6
  %s9 = scalar_select 0, %s8, %s6
  // Predicated region
  $region2: #{mlp_predictor_forward.3} parent=0 // pred_check
    _
  $region3: #{mlp_predictor_forward.3} parent=0 // pred_check_branch
    %11 = sbr.rel (0) target = $region5
  $region4: #{mlp_predictor_forward.3} parent=0 // pred_region
    _
  $region5: #{mlp_predictor_forward.3} parent=0 // pred_fallthru
    _
  // Predicated region
  $region6: #{mlp_predictor_forward.3} parent=0 // pred_check
    _
  $region7: #{mlp_predictor_forward.3} parent=0 // pred_check_branch
    %13 = sbr.rel (0) target = $region9
  $region8: #{mlp_predictor_forward.3} parent=0 // pred_region
    _
  $region9: #{mlp_predictor_forward.3} parent=0 // pred_fallthru
    _
  // Predicated region
  $region10: #{mlp_predictor_forward.3} parent=0 // pred_check
    _
  $region11: #{mlp_predictor_forward.3} parent=0 // pred_check_branch
    %15 = sbr.rel (0) target = $region13
  $region12: #{mlp_predictor_forward.3} parent=0 // pred_region
    _
  $region13: #{mlp_predictor_forward.3} parent=0 // pred_fallthru
    _
  // Predicated region
  $region14: #{mlp_predictor_forward.3} parent=0 // pred_check
    _
  $region15: #{mlp_predictor_forward.3} parent=0 // pred_check_branch
    %17 = sbr.rel (0) target = $region17
  $region16: #{mlp_predictor_forward.3} parent=0 // pred_region
    _
  $region17: #{mlp_predictor_forward.3} parent=0 // pred_fallthru
    _
  // Predicated region
  $region18: #{mlp_predictor_forward.3} parent=0 // pred_check
    _
  $region19: #{mlp_predictor_forward.3} parent=0 // pred_check_branch
    %19 = sbr.rel (0) target = $region21
  $region20: #{mlp_predictor_forward.3} parent=0 // pred_region
    _
  $region21: #{mlp_predictor_forward.3} parent=0 // pred_fallthru
    _
  %v20 = vld [vmem:[%s0] sm:$0x1]
  %v21 = vld [vmem:[%s1] sm:$0x1]
  %v22 = vlaneseq
  %v23 = vshrl.u32 %v22, 7
  %v24 = vadd.s32 %v23, 8
  %v25 = vadd.s32 %v23, 16
  %v26 = vadd.s32 %v23, 24
  %v27 = vadd.s32 %v23, 32
  %v28 = vadd.s32 %v23, 40
  %v29 = vadd.s32 %v23, 48
  %v30 = vadd.s32 %v23, 56
  %v31 = vadd.s32 %v23, 64
  %v32 = vadd.s32 %v23, 72
  %v33 = vadd.s32 %v23, 80
  %v34 = vadd.s32 %v23, 88
  %v35 = vadd.s32 %v23, 96
  %v36 = vadd.s32 %v23, 104
  %v37 = vadd.s32 %v23, 112
  %v38 = vadd.s32 %v23, 120
  %v39 = vstv 0
  %v40 = vadd.s32 %v23, %v39
  %v41 = vadd.s32 %v24, %v39
  %v42 = vadd.s32 %v25, %v39
  %v43 = vadd.s32 %v26, %v39
  %v44 = vadd.s32 %v27, %v39
  %v45 = vadd.s32 %v28, %v39
  %v46 = vadd.s32 %v29, %v39
  %v47 = vadd.s32 %v30, %v39
  %v48 = vadd.s32 %v31, %v39
  %v49 = vadd.s32 %v32, %v39
  %v50 = vadd.s32 %v33, %v39
  %v51 = vadd.s32 %v34, %v39
  %v52 = vadd.s32 %v35, %v39
  %v53 = vadd.s32 %v36, %v39
  %v54 = vadd.s32 %v37, %v39
  %v55 = vadd.s32 %v38, %v39
  %v56 = vperm.slane %v20, 0
  %vm57 = vcmp.eq.s32.totalorder %v40, %v56
  %vm58 = vcmp.eq.s32.totalorder %v41, %v56
  %vm59 = vcmp.eq.s32.totalorder %v42, %v56
  %vm60 = vcmp.eq.s32.totalorder %v43, %v56
  %vm61 = vcmp.eq.s32.totalorder %v44, %v56
  %vm62 = vcmp.eq.s32.totalorder %v45, %v56
  %vm63 = vcmp.eq.s32.totalorder %v46, %v56
  %vm64 = vcmp.eq.s32.totalorder %v47, %v56
  %vm65 = vcmp.eq.s32.totalorder %v48, %v56
  %vm66 = vcmp.eq.s32.totalorder %v49, %v56
  %vm67 = vcmp.eq.s32.totalorder %v50, %v56
  %vm68 = vcmp.eq.s32.totalorder %v51, %v56
  %vm69 = vcmp.eq.s32.totalorder %v52, %v56
  %vm70 = vcmp.eq.s32.totalorder %v53, %v56
  %vm71 = vcmp.eq.s32.totalorder %v54, %v56
  %vm72 = vcmp.eq.s32.totalorder %v55, %v56
  %v73 = vsel %vm57, 1, 0
  %v74 = vsel %vm58, 1, 0
  %v75 = vsel %vm59, 1, 0
  %v76 = vsel %vm60, 1, 0
  %v77 = vsel %vm61, 1, 0
  %v78 = vsel %vm62, 1, 0
  %v79 = vsel %vm63, 1, 0
  %v80 = vsel %vm64, 1, 0
  %v81 = vsel %vm65, 1, 0
  %v82 = vsel %vm66, 1, 0
  %v83 = vsel %vm67, 1, 0
  %v84 = vsel %vm68, 1, 0
  %v85 = vsel %vm69, 1, 0
  %v86 = vsel %vm70, 1, 0
  %v87 = vsel %vm71, 1, 0
  %v88 = vsel %vm72, 1, 0
  %v89 = vcvt.s32.f32 %v73
  %v90 = vcvt.s32.f32 %v74
  %v91 = vcvt.s32.f32 %v75
  %v92 = vcvt.s32.f32 %v76
  %v93 = vcvt.s32.f32 %v77
  %v94 = vcvt.s32.f32 %v78
  %v95 = vcvt.s32.f32 %v79
  %v96 = vcvt.s32.f32 %v80
  %v97 = vcvt.s32.f32 %v81
  %v98 = vcvt.s32.f32 %v82
  %v99 = vcvt.s32.f32 %v83
  %v100 = vcvt.s32.f32 %v84
  %v101 = vcvt.s32.f32 %v85
  %v102 = vcvt.s32.f32 %v86
  %v103 = vcvt.s32.f32 %v87
  %v104 = vcvt.s32.f32 %v88
  %v105 = vperm.slane %v21, 0
  %vm106 = vcmp.eq.s32.totalorder %v40, %v105
  %vm107 = vcmp.eq.s32.totalorder %v41, %v105
  %vm108 = vcmp.eq.s32.totalorder %v42, %v105
  %vm109 = vcmp.eq.s32.totalorder %v43, %v105
  %vm110 = vcmp.eq.s32.totalorder %v44, %v105
  %vm111 = vcmp.eq.s32.totalorder %v45, %v105
  %vm112 = vcmp.eq.s32.totalorder %v46, %v105
  %vm113 = vcmp.eq.s32.totalorder %v47, %v105
  %vm114 = vcmp.eq.s32.totalorder %v48, %v105
  %vm115 = vcmp.eq.s32.totalorder %v49, %v105
  %vm116 = vcmp.eq.s32.totalorder %v50, %v105
  %vm117 = vcmp.eq.s32.totalorder %v51, %v105
  %vm118 = vcmp.eq.s32.totalorder %v52, %v105
  %vm119 = vcmp.eq.s32.totalorder %v53, %v105
  %vm120 = vcmp.eq.s32.totalorder %v54, %v105
  %vm121 = vcmp.eq.s32.totalorder %v55, %v105
  %v122 = vsel %vm106, 1, 0
  %v123 = vsel %vm107, 1, 0
  %v124 = vsel %vm108, 1, 0
  %v125 = vsel %vm109, 1, 0
  %v126 = vsel %vm110, 1, 0
  %v127 = vsel %vm111, 1, 0
  %v128 = vsel %vm112, 1, 0
  %v129 = vsel %vm113, 1, 0
  %v130 = vsel %vm114, 1, 0
  %v131 = vsel %vm115, 1, 0
  %v132 = vsel %vm116, 1, 0
  %v133 = vsel %vm117, 1, 0
  %v134 = vsel %vm118, 1, 0
  %v135 = vsel %vm119, 1, 0
  %v136 = vsel %vm120, 1, 0
  %v137 = vsel %vm121, 1, 0
  %v138 = vcvt.s32.f32 %v122
  %v139 = vcvt.s32.f32 %v123
  %v140 = vcvt.s32.f32 %v124
  %v141 = vcvt.s32.f32 %v125
  %v142 = vcvt.s32.f32 %v126
  %v143 = vcvt.s32.f32 %v127
  %v144 = vcvt.s32.f32 %v128
  %v145 = vcvt.s32.f32 %v129
  %v146 = vcvt.s32.f32 %v130
  %v147 = vcvt.s32.f32 %v131
  %v148 = vcvt.s32.f32 %v132
  %v149 = vcvt.s32.f32 %v133
  %v150 = vcvt.s32.f32 %v134
  %v151 = vcvt.s32.f32 %v135
  %v152 = vcvt.s32.f32 %v136
  %v153 = vcvt.s32.f32 %v137
  %v154 = vld [vmem:[%s2] sm:$0xff]
  %v155 = vld [vmem:[%s3] sm:$0xff]
  %156 = vmatpush.msra.mxu0 %v153
  %157 = vmatpush.msra.mxu0 %v152
  %158 = vmatpush.msra.mxu0 %v151
  %159 = vmatpush.msra.mxu0 %v150
  %160 = vmatpush.msra.mxu0 %v149
  %161 = vmatpush.msra.mxu0 %v148
  %162 = vmatpush.msra.mxu0 %v147
  %163 = vmatpush.msra.mxu0 %v146
  %164 = vmatpush.msra.mxu0 %v145
  %165 = vmatpush.msra.mxu0 %v144
  %166 = vmatpush.msra.mxu0 %v143
  %167 = vmatpush.msra.mxu0 %v142
  %168 = vmatpush.msra.mxu0 %v141
  %169 = vmatpush.msra.mxu0 %v140
  %170 = vmatpush.msra.mxu0 %v139
  %171 = vmatpush.msra.mxu0 %v138
  %172 = vmatmul.f32.gmra.mxu0 %v155
  %v173 = vpop.f32.mrf.mxu0
  %v174 = vadd.f32 0.0, %v173
  %175 = vdwg.mxu0
  %176 = vmatpush.msra.mxu0 %v104
  %177 = vmatpush.msra.mxu0 %v103
  %178 = vmatpush.msra.mxu0 %v102
  %179 = vmatpush.msra.mxu0 %v101
  %180 = vmatpush.msra.mxu0 %v100
  %181 = vmatpush.msra.mxu0 %v99
  %182 = vmatpush.msra.mxu0 %v98
  %183 = vmatpush.msra.mxu0 %v97
  %184 = vmatpush.msra.mxu0 %v96
  %185 = vmatpush.msra.mxu0 %v95
  %186 = vmatpush.msra.mxu0 %v94
  %187 = vmatpush.msra.mxu0 %v93
  %188 = vmatpush.msra.mxu0 %v92
  %189 = vmatpush.msra.mxu0 %v91
  %190 = vmatpush.msra.mxu0 %v90
  %191 = vmatpush.msra.mxu0 %v89
  %192 = vmatmul.f32.gmra.mxu0 %v154
  %v193 = vpop.f32.mrf.mxu0
  %v194 = vadd.f32 %v174, %v193
  %195 = vdwg.mxu0
  %v196 = vld [vmem:[%s4] sm:$0xff]
  %198 = vset.pattern.permute.xlu0 0
  %199 = vperm.xlu0 %198, %v196
  %v200 = vpop.permute.xlu0 %199
  %v202 = vadd.f32 %v194, %v200
  %203 = vst [vmem:[%s5] sm:$0xff] %v202
  // Predicated region
  $region22: #{mlp_predictor_forward.3} parent=0 // pred_check
    _
  $region23: #{mlp_predictor_forward.3} parent=0 // pred_check_branch
    %205 = sbr.rel (0) target = $region25
  $region24: #{mlp_predictor_forward.3} parent=0 // pred_region
    _
  $region25: #{mlp_predictor_forward.3} parent=0 // pred_fallthru
    _
  // Predicated region
  $region26: #{mlp_predictor_forward.3} parent=0 // pred_check
    _
  $region27: #{mlp_predictor_forward.3} parent=0 // pred_check_branch
    %207 = sbr.rel (0) target = $region29
  $region28: #{mlp_predictor_forward.3} parent=0 // pred_region
    _
  $region29: #{mlp_predictor_forward.3} parent=0 // pred_fallthru
    _

// kernel: mlp_predictor_forward.2
$region0: #{mlp_predictor_forward.2}
  #allocation0 [shape = 'u32[]', space=smem, size = 0x4, offset = 0x4, fixed_abs, tag = 'smem constant byte address 0x4 - core index']
  #allocation1 [shape = 'u32[72,128]{1,0:T(1,128)}', space=vmem, size = 0x9000, scoped, tag = 'internal scratch']
  %s0 = inlined_call_operand.vmem [shape: f32[128,32], index: 0, kind: input, shape index: {}]
  %s1 = inlined_call_operand.vmem [shape: f32[8,32], index: 1, kind: input, shape index: {}]
  %s2 = inlined_call_operand.vmem [shape: f32[8,32], index: 2, kind: input, shape index: {}]
  %s3 = inlined_call_operand.vmem [shape: f32[8,128], index: 3, kind: output, shape index: {0}]
  %s4 = inlined_call_operand.vmem [shape: f32[8,128], index: 4, kind: output, shape index: {1}]
  %5 = xla_tuple %s3, %s4
  %s6 = sld [smem:[#allocation0]]
  $region30: #{mlp_predictor_forward.2} parent=0
    _
  %s8 = ssub.s32 1, %s6
  %s9 = scalar_select 0, %s8, %s6
  // Predicated region
  $region2: #{mlp_predictor_forward.2} parent=0 // pred_check
    _
  $region3: #{mlp_predictor_forward.2} parent=0 // pred_check_branch
    %11 = sbr.rel (0) target = $region5
  $region4: #{mlp_predictor_forward.2} parent=0 // pred_region
    _
  $region5: #{mlp_predictor_forward.2} parent=0 // pred_fallthru
    _
  // Predicated region
  $region6: #{mlp_predictor_forward.2} parent=0 // pred_check
    _
  $region7: #{mlp_predictor_forward.2} parent=0 // pred_check_branch
    %13 = sbr.rel (0) target = $region9
  $region8: #{mlp_predictor_forward.2} parent=0 // pred_region
    _
  $region9: #{mlp_predictor_forward.2} parent=0 // pred_fallthru
    _
  // Predicated region
  $region10: #{mlp_predictor_forward.2} parent=0 // pred_check
    _
  $region11: #{mlp_predictor_forward.2} parent=0 // pred_check_branch
    %15 = sbr.rel (0) target = $region13
  $region12: #{mlp_predictor_forward.2} parent=0 // pred_region
    _
  $region13: #{mlp_predictor_forward.2} parent=0 // pred_fallthru
    _
  %v16 = vld [vmem:[%s0] sm:$0xff]
  %v17 = vld [vmem:[%s0 + $0x8] sm:$0xff]
  %v18 = vld [vmem:[%s0 + $0x10] sm:$0xff]
  %v19 = vld [vmem:[%s0 + $0x18] sm:$0xff]
  %v20 = vld [vmem:[%s0 + $0x20] sm:$0xff]
  %v21 = vld [vmem:[%s0 + $0x28] sm:$0xff]
  %v22 = vld [vmem:[%s0 + $0x30] sm:$0xff]
  %v23 = vld [vmem:[%s0 + $0x38] sm:$0xff]
  %v24 = vld [vmem:[%s0 + $0x40] sm:$0xff]
  %v25 = vld [vmem:[%s0 + $0x48] sm:$0xff]
  %v26 = vld [vmem:[%s0 + $0x50] sm:$0xff]
  %v27 = vld [vmem:[%s0 + $0x58] sm:$0xff]
  %v28 = vld [vmem:[%s0 + $0x60] sm:$0xff]
  %v29 = vld [vmem:[%s0 + $0x68] sm:$0xff]
  %v30 = vld [vmem:[%s0 + $0x70] sm:$0xff]
  %v31 = vld [vmem:[%s0 + $0x78] sm:$0xff]
  %v32 = vld [vmem:[%s1] sm:$0xff]
  %vm33 = vcmask 261120
  %v35 = vsel %vm33, %v32, 0
  %v38 = vsel %vm33, %v16, 0
  %v41 = vsel %vm33, %v17, 0
  %v44 = vsel %vm33, %v18, 0
  %v47 = vsel %vm33, %v19, 0
  %v50 = vsel %vm33, %v20, 0
  %v53 = vsel %vm33, %v21, 0
  %v56 = vsel %vm33, %v22, 0
  %v59 = vsel %vm33, %v23, 0
  %v62 = vsel %vm33, %v24, 0
  %v65 = vsel %vm33, %v25, 0
  %v68 = vsel %vm33, %v26, 0
  %v71 = vsel %vm33, %v27, 0
  %v74 = vsel %vm33, %v28, 0
  %v77 = vsel %vm33, %v29, 0
  %v80 = vsel %vm33, %v30, 0
  %v83 = vsel %vm33, %v31, 0
  %85 = vmatpush.xpose.msra.mxu0 %v83
  %86 = vmatpush.xpose.msra.mxu0 %v80
  %87 = vmatpush.xpose.msra.mxu0 %v77
  %88 = vmatpush.xpose.msra.mxu0 %v74
  %89 = vmatpush.xpose.msra.mxu0 %v71
  %90 = vmatpush.xpose.msra.mxu0 %v68
  %91 = vmatpush.xpose.msra.mxu0 %v65
  %92 = vmatpush.xpose.msra.mxu0 %v62
  %93 = vmatpush.xpose.msra.mxu0 %v59
  %94 = vmatpush.xpose.msra.mxu0 %v56
  %95 = vmatpush.xpose.msra.mxu0 %v53
  %96 = vmatpush.xpose.msra.mxu0 %v50
  %97 = vmatpush.xpose.msra.mxu0 %v47
  %98 = vmatpush.xpose.msra.mxu0 %v44
  %99 = vmatpush.xpose.msra.mxu0 %v41
  %100 = vmatpush.xpose.msra.mxu0 %v38
  %101 = vmatmul.f32.gmra.mxu0 %v35
  %v102 = vpop.f32.mrf.mxu0
  %v103 = vadd.f32 0.0, %v102
  %104 = vdwg.mxu0
  %105 = vst [vmem:[%s3] sm:$0xff] %v103
  %v106 = vld [vmem:[%s2] sm:$0xff]
  %v108 = vsel %vm33, %v106, 0
  %110 = vmatpush.xpose.msra.mxu0 %v83
  %111 = vmatpush.xpose.msra.mxu0 %v80
  %112 = vmatpush.xpose.msra.mxu0 %v77
  %113 = vmatpush.xpose.msra.mxu0 %v74
  %114 = vmatpush.xpose.msra.mxu0 %v71
  %115 = vmatpush.xpose.msra.mxu0 %v68
  %116 = vmatpush.xpose.msra.mxu0 %v65
  %117 = vmatpush.xpose.msra.mxu0 %v62
  %118 = vmatpush.xpose.msra.mxu0 %v59
  %119 = vmatpush.xpose.msra.mxu0 %v56
  %120 = vmatpush.xpose.msra.mxu0 %v53
  %121 = vmatpush.xpose.msra.mxu0 %v50
  %122 = vmatpush.xpose.msra.mxu0 %v47
  %123 = vmatpush.xpose.msra.mxu0 %v44
  %124 = vmatpush.xpose.msra.mxu0 %v41
  %125 = vmatpush.xpose.msra.mxu0 %v38
  %126 = vmatmul.f32.gmra.mxu0 %v108
  %v127 = vpop.f32.mrf.mxu0
  %v128 = vadd.f32 0.0, %v127
  %129 = vdwg.mxu0
  %130 = vst [vmem:[%s4] sm:$0xff] %v128
  // Predicated region
  $region14: #{mlp_predictor_forward.2} parent=0 // pred_check
    _
  $region15: #{mlp_predictor_forward.2} parent=0 // pred_check_branch
    %132 = sbr.rel (0) target = $region17
  $region16: #{mlp_predictor_forward.2} parent=0 // pred_region
    _
  $region17: #{mlp_predictor_forward.2} parent=0 // pred_fallthru
    _
  // Predicated region
  $region18: #{mlp_predictor_forward.2} parent=0 // pred_check
    _
  $region19: #{mlp_predictor_forward.2} parent=0 // pred_check_branch
    %134 = sbr.rel (0) target = $region21
  $region20: #{mlp_predictor_forward.2} parent=0 // pred_region
    _
  $region21: #{mlp_predictor_forward.2} parent=0 // pred_fallthru
    _
  // Predicated region
  $region22: #{mlp_predictor_forward.2} parent=0 // pred_check
    _
  $region23: #{mlp_predictor_forward.2} parent=0 // pred_check_branch
    %136 = sbr.rel (0) target = $region25
  $region24: #{mlp_predictor_forward.2} parent=0 // pred_region
    _
  $region25: #{mlp_predictor_forward.2} parent=0 // pred_fallthru
    _
  // Predicated region
  $region26: #{mlp_predictor_forward.2} parent=0 // pred_check
    _
  $region27: #{mlp_predictor_forward.2} parent=0 // pred_check_branch
    %138 = sbr.rel (0) target = $region29
  $region28: #{mlp_predictor_forward.2} parent=0 // pred_region
    _
  $region29: #{mlp_predictor_forward.2} parent=0 // pred_fallthru
    _

</llo_original>
